<compile_context>
chip_gen: v7x
topology: tpu7x:2x2x1
jax: 0.10.0
libtpu: 0.0.40
codegen_flags: <defaults>
</compile_context>

<pallas_src>
import functools
import math

import jax
import jax.numpy as jnp
from jax.experimental import pallas as pl
from jax.experimental.pallas import tpu as pltpu

EPS = 1e-5  # PyTorch BatchNorm1d default eps


def _round_up(n, m):
    return ((n + m - 1) // m) * m


def _vmem_cap_bytes():
    """Generation-aware VMEM request ceiling (~80% of physical per-TC VMEM)."""
    phys = 64 << 20  # conservative fallback: v7x per-TC VMEM
    try:
        info = pltpu.get_tpu_info()
        phys = int(getattr(info, "vmem_capacity_bytes", phys))
    except Exception:
        pass
    return int(phys * 0.8)


# --------------------------------------------------------------------------- kernel
def deep_classifier_kernel(
    x_ref,                      # [tile, D_in]  f32
    s1_ref, t1_ref,             # folded BN1 scale/shift, [1, D_in] f32
    w1_ref, b1_ref,             # Linear1 (BN2 folded):  D_in -> 2H
    w2_ref, b2_ref,             # Linear2 (BN3 folded):  2H   -> 2H
    w3_ref, b3_ref,             # Linear3 (BN4 folded):  2H   -> H
    w4_ref, b4_ref,             # Linear4 (lane-padded): H    -> C_pad
    out_ref,                    # [tile, C_pad] bf16
):
    # TODO(synk): Dropout is identity in eval mode; training-mode dropout and
    # batch-statistics BatchNorm are not implemented.
    x = x_ref[...]

    # BN1 (pre-folded scale/shift) + ReLU  (VPU, f32)
    h = jnp.maximum(x * s1_ref[...] + t1_ref[...], 0.0)

    # Linear1 + folded BN2 + ReLU
    h = jnp.dot(h.astype(w1_ref.dtype), w1_ref[...],
                preferred_element_type=jnp.float32) + b1_ref[...]
    h = jnp.maximum(h, 0.0)

    # Linear2 + folded BN3 + ReLU
    h = jnp.dot(h.astype(w2_ref.dtype), w2_ref[...],
                preferred_element_type=jnp.float32) + b2_ref[...]
    h = jnp.maximum(h, 0.0)

    # Linear3 + folded BN4 + ReLU
    h = jnp.dot(h.astype(w3_ref.dtype), w3_ref[...],
                preferred_element_type=jnp.float32) + b3_ref[...]
    h = jnp.maximum(h, 0.0)

    # Linear4 (output padded to a lane-dense 128-wide tile), store as bf16.
    out_ref[...] = (
        jnp.dot(h.astype(w4_ref.dtype), w4_ref[...],
                preferred_element_type=jnp.float32) + b4_ref[...]
    ).astype(out_ref.dtype)


# --------------------------------------------------------------------------- wrapper
@functools.partial(jax.jit, static_argnames=("num_classes", "batch_tile"))
def deep_classifier_forward(x, packed, num_classes, batch_tile=512):
    """x: [B, input_dim] f32.  packed: dict from prepack_params()."""
    B, d_in = x.shape
    c_pad = packed["w4"].shape[1]

    # One big tile for small/medium batches (single grid step: grid iterations
    # are sequential on one TensorCore on v5e/v6e, so splitting only adds
    # per-step overhead and re-does MXU weight loads).  For B > batch_tile the
    # batch splits into >= 2 "parallel" steps of batch_tile rows each, which is
    # large enough to amortize weight loads per core on v7x megacore.
    batch_tile = max(16, _round_up(batch_tile, 16))
    tile = min(batch_tile, _round_up(B, 16))   # multiple of 16 (bf16 out sublanes)
    b_pad = _round_up(B, tile)
    if b_pad != B:
        x = jnp.pad(x, ((0, b_pad - B), (0, 0)))

    ordered = [
        packed["s1"], packed["t1"],
        packed["w1"], packed["b1"],
        packed["w2"], packed["b2"],
        packed["w3"], packed["b3"],
        packed["w4"], packed["b4"],
    ]

    def full_spec(arr):
        # Constant index_map -> the block is never re-fetched across grid steps.
        return pl.BlockSpec(arr.shape, lambda i: (0, 0))

    in_specs = [pl.BlockSpec((tile, d_in), lambda i: (i, 0))]
    in_specs += [full_spec(a) for a in ordered]

    # Explicit VMEM budget: conservatively count double-buffered weights, both
    # pipeline I/O buffers, and the in-kernel f32 + bf16-cast intermediates.
    param_bytes = sum(math.prod(a.shape) * a.dtype.itemsize for a in ordered)
    io_bytes = tile * d_in * 4 + tile * c_pad * 2
    widths = [d_in, packed["w1"].shape[1], packed["w2"].shape[1],
              packed["w3"].shape[1], c_pad]
    inter_bytes = tile * sum(widths) * 6          # f32 value + bf16 cast copy
    need = 2 * param_bytes + 2 * io_bytes + inter_bytes + (8 << 20)
    vmem_bytes = int(min(_vmem_cap_bytes(), max(32 << 20, need)))

    out = pl.pallas_call(
        deep_classifier_kernel,
        out_shape=jax.ShapeDtypeStruct((b_pad, c_pad), jnp.bfloat16),
        grid_spec=pltpu.PrefetchScalarGridSpec(
            num_scalar_prefetch=0,
            grid=(b_pad // tile,),
            in_specs=in_specs,
            out_specs=pl.BlockSpec((tile, c_pad), lambda i: (i, 0)),
        ),
        compiler_params=pltpu.CompilerParams(
            dimension_semantics=("parallel",),
            vmem_limit_bytes=vmem_bytes,
        ),
    )(x, *ordered)

    return out[:B, :num_classes].astype(jnp.float32)


# --------------------------------------------------------------------------- params
def init_raw_params(key, input_dim, hidden_dim, num_classes):
    """Deterministic synthetic parameters matching DeepClassifier's shapes.
    Linear weights stored transposed as [in, out]; BN vectors as [1, D]."""
    h, h2 = hidden_dim, 2 * hidden_dim
    keys = jax.random.split(key, 32)
    ki = iter(keys)

    def lin(in_d, out_d):
        w = jax.random.normal(next(ki), (in_d, out_d), jnp.float32) * 0.05
        b = jax.random.normal(next(ki), (1, out_d), jnp.float32) * 0.05
        return w, b

    def bn(d):
        gamma = 1.0 + 0.1 * jax.random.normal(next(ki), (1, d), jnp.float32)
        beta = 0.1 * jax.random.normal(next(ki), (1, d), jnp.float32)
        mean = 0.1 * jax.random.normal(next(ki), (1, d), jnp.float32)
        var = 1.0 + 0.1 * jax.random.uniform(next(ki), (1, d), jnp.float32)
        return gamma, beta, mean, var

    p = {}
    p["g1"], p["b1"], p["m1"], p["v1"] = bn(input_dim)
    p["w1"], p["c1"] = lin(input_dim, h2)
    p["g2"], p["b2"], p["m2"], p["v2"] = bn(h2)
    p["w2"], p["c2"] = lin(h2, h2)
    p["g3"], p["b3"], p["m3"], p["v3"] = bn(h2)
    p["w3"], p["c3"] = lin(h2, h)
    p["g4"], p["b4"], p["m4"], p["v4"] = bn(h)
    p["w4"], p["c4"] = lin(h, num_classes)
    return p


def prepack_params(raw, num_classes, dot_dtype=jnp.bfloat16):
    """Fold eval-mode BatchNorm into scale/shift & preceding Linear weights, cast
    weights to the MXU dtype, and zero-pad the final Linear to 128 output lanes."""
    def scale_shift(g, b, m, v):
        s = g * jax.lax.rsqrt(v + EPS)
        return s, b - m * s

    s1, t1 = scale_shift(raw["g1"], raw["b1"], raw["m1"], raw["v1"])
    s2, t2 = scale_shift(raw["g2"], raw["b2"], raw["m2"], raw["v2"])
    s3, t3 = scale_shift(raw["g3"], raw["b3"], raw["m3"], raw["v3"])
    s4, t4 = scale_shift(raw["g4"], raw["b4"], raw["m4"], raw["v4"])

    # Fold BN_{k+1} into Linear_k:  (x @ W + b) * s + t == x @ (W*s) + (b*s + t)
    w1 = raw["w1"] * s2; b1 = raw["c1"] * s2 + t2
    w2 = raw["w2"] * s3; b2 = raw["c2"] * s3 + t3
    w3 = raw["w3"] * s4; b3 = raw["c3"] * s4 + t4

    # Lane-dense output: pad the final Linear from num_classes to a multiple of 128.
    c_pad = _round_up(max(num_classes, 1), 128)
    h = raw["w4"].shape[0]
    w4 = jnp.zeros((h, c_pad), jnp.float32).at[:, :num_classes].set(raw["w4"])
    b4 = jnp.zeros((1, c_pad), jnp.float32).at[:, :num_classes].set(raw["c4"])

    return {
        "s1": s1, "t1": t1,
        "w1": w1.astype(dot_dtype), "b1": b1,
        "w2": w2.astype(dot_dtype), "b2": b2,
        "w3": w3.astype(dot_dtype), "b3": b3,
        "w4": w4.astype(dot_dtype), "b4": b4,
    }


# --------------------------------------------------------------------------- refs
def reference_forward_raw(x, p):
    """Pure-JAX f32 reference of the eval-mode PyTorch forward (unfolded BN)."""
    def bn(x, g, b, m, v):
        return (x - m) / jnp.sqrt(v + EPS) * g + b

    h = jnp.maximum(bn(x, p["g1"], p["b1"], p["m1"], p["v1"]), 0.0)
    h = h @ p["w1"] + p["c1"]
    h = jnp.maximum(bn(h, p["g2"], p["b2"], p["m2"], p["v2"]), 0.0)
    h = h @ p["w2"] + p["c2"]
    h = jnp.maximum(bn(h, p["g3"], p["b3"], p["m3"], p["v3"]), 0.0)
    h = h @ p["w3"] + p["c3"]
    h = jnp.maximum(bn(h, p["g4"], p["b4"], p["m4"], p["v4"]), 0.0)
    return h @ p["w4"] + p["c4"]


def reference_forward_packed(x, packed, num_classes):
    """Pure-JAX reference mirroring the kernel's folded-BN / bf16 numerics,
    including the bf16 output rounding."""
    def dot(a, w):
        return jnp.dot(a.astype(w.dtype), w, preferred_element_type=jnp.float32)

    h = jnp.maximum(x * packed["s1"] + packed["t1"], 0.0)
    h = jnp.maximum(dot(h, packed["w1"]) + packed["b1"], 0.0)
    h = jnp.maximum(dot(h, packed["w2"]) + packed["b2"], 0.0)
    h = jnp.maximum(dot(h, packed["w3"]) + packed["b3"], 0.0)
    out = dot(h, packed["w4"]) + packed["b4"]
    out = out.astype(jnp.bfloat16).astype(jnp.float32)
    return out[:, :num_classes]


# --------------------------------------------------------------------------- main
if __name__ == "__main__":
    # Small shapes consistent with the module (lane-aligned hidden/input dims).
    B, INPUT_DIM, HIDDEN, NUM_CLASSES = 64, 256, 128, 3

    key = jax.random.PRNGKey(0)
    k_x, k_p = jax.random.split(key)
    x = jax.random.normal(k_x, (B, INPUT_DIM), jnp.float32)

    raw = init_raw_params(k_p, INPUT_DIM, HIDDEN, NUM_CLASSES)
    packed = prepack_params(raw, NUM_CLASSES, dot_dtype=jnp.bfloat16)

    out = deep_classifier_forward(x, packed, num_classes=NUM_CLASSES)
    out = jax.block_until_ready(out)
    assert out.shape == (B, NUM_CLASSES)

    # Strict check against a reference with identical folded/bf16 numerics.
    ref_packed = reference_forward_packed(x, packed, NUM_CLASSES)
    assert jnp.allclose(out, ref_packed, atol=5e-3, rtol=5e-3), float(
        jnp.max(jnp.abs(out - ref_packed)))

    # Looser check against the full-precision, unfolded eval-mode math.
    ref_raw = reference_forward_raw(x, raw)
    assert jnp.allclose(out, ref_raw, atol=5e-2, rtol=5e-2), float(
        jnp.max(jnp.abs(out - ref_raw)))

    print("KERNEL_OK")
</pallas_src>

<mosaic_0001>
module attributes {stable_mosaic.version = 11 : i64} {
  func.func @deep_classifier_kernel(%arg0: i32, %arg1: memref<64x256xf32, #tpu.memory_space<vmem>>, %arg2: memref<1x256xf32, #tpu.memory_space<vmem>>, %arg3: memref<1x256xf32, #tpu.memory_space<vmem>>, %arg4: memref<256x256xbf16, #tpu.memory_space<vmem>>, %arg5: memref<1x256xf32, #tpu.memory_space<vmem>>, %arg6: memref<256x256xbf16, #tpu.memory_space<vmem>>, %arg7: memref<1x256xf32, #tpu.memory_space<vmem>>, %arg8: memref<256x128xbf16, #tpu.memory_space<vmem>>, %arg9: memref<1x128xf32, #tpu.memory_space<vmem>>, %arg10: memref<128x128xbf16, #tpu.memory_space<vmem>>, %arg11: memref<1x128xf32, #tpu.memory_space<vmem>>, %arg12: memref<64x128xbf16, #tpu.memory_space<vmem>>) attributes {dimension_semantics = [#tpu.dimension_semantics<parallel>], iteration_bounds = array<i64: 1>, scalar_prefetch = 0 : i64, scratch_operands = 0 : i64, tpu.core_type = #tpu.core_type<tc>, window_params = [{transform_indices = @transform_0, window_bounds = array<i64: 64, 256>}, {pipeline_mode = #tpu.pipeline_mode<synchronous>, transform_indices = @transform_1, window_bounds = array<i64: 1, 256>}, {pipeline_mode = #tpu.pipeline_mode<synchronous>, transform_indices = @transform_2, window_bounds = array<i64: 1, 256>}, {pipeline_mode = #tpu.pipeline_mode<synchronous>, transform_indices = @transform_3, window_bounds = array<i64: 256, 256>}, {pipeline_mode = #tpu.pipeline_mode<synchronous>, transform_indices = @transform_4, window_bounds = array<i64: 1, 256>}, {pipeline_mode = #tpu.pipeline_mode<synchronous>, transform_indices = @transform_5, window_bounds = array<i64: 256, 256>}, {pipeline_mode = #tpu.pipeline_mode<synchronous>, transform_indices = @transform_6, window_bounds = array<i64: 1, 256>}, {pipeline_mode = #tpu.pipeline_mode<synchronous>, transform_indices = @transform_7, window_bounds = array<i64: 256, 128>}, {pipeline_mode = #tpu.pipeline_mode<synchronous>, transform_indices = @transform_8, window_bounds = array<i64: 1, 128>}, {pipeline_mode = #tpu.pipeline_mode<synchronous>, transform_indices = @transform_9, window_bounds = array<i64: 128, 128>}, {pipeline_mode = #tpu.pipeline_mode<synchronous>, transform_indices = @transform_10, window_bounds = array<i64: 1, 128>}, {transform_indices = @transform_11, window_bounds = array<i64: 64, 128>}]} {
    %c0 = arith.constant 0 : index
    %c0_0 = arith.constant 0 : index
    %0 = vector.load %arg1[%c0, %c0_0] : memref<64x256xf32, #tpu.memory_space<vmem>>, vector<64x256xf32>
    %c0_1 = arith.constant 0 : index
    %c0_2 = arith.constant 0 : index
    %1 = vector.load %arg2[%c0_1, %c0_2] : memref<1x256xf32, #tpu.memory_space<vmem>>, vector<1x256xf32>
    %2 = vector.broadcast %1 : vector<1x256xf32> to vector<64x256xf32>
    %3 = arith.mulf %0, %2 : vector<64x256xf32>
    %c0_3 = arith.constant 0 : index
    %c0_4 = arith.constant 0 : index
    %4 = vector.load %arg3[%c0_3, %c0_4] : memref<1x256xf32, #tpu.memory_space<vmem>>, vector<1x256xf32>
    %5 = vector.broadcast %4 : vector<1x256xf32> to vector<64x256xf32>
    %6 = arith.addf %3, %5 : vector<64x256xf32>
    %cst = arith.constant 0.000000e+00 : f32
    %7 = vector.broadcast %cst : f32 to vector<64x256xf32>
    %8 = arith.maximumf %6, %7 : vector<64x256xf32>
    %9 = arith.truncf %8 : vector<64x256xf32> to vector<64x256xbf16>
    %c0_5 = arith.constant 0 : index
    %c0_6 = arith.constant 0 : index
    %10 = vector.load %arg4[%c0_5, %c0_6] : memref<256x256xbf16, #tpu.memory_space<vmem>>, vector<256x256xbf16>
    %cst_7 = arith.constant dense<0.000000e+00> : vector<64x256xf32>
    %11 = tpu.matmul %9, %10, %cst_7 {dimension_numbers = #tpu.dot_dimension_numbers<[1], [0], [0], [1], [0, 0, 1, 1], [], []>} : vector<64x256xbf16>, vector<256x256xbf16>, vector<64x256xf32> -> vector<64x256xf32>
    %c0_8 = arith.constant 0 : index
    %c0_9 = arith.constant 0 : index
    %12 = vector.load %arg5[%c0_8, %c0_9] : memref<1x256xf32, #tpu.memory_space<vmem>>, vector<1x256xf32>
    %13 = vector.broadcast %12 : vector<1x256xf32> to vector<64x256xf32>
    %14 = arith.addf %11, %13 : vector<64x256xf32>
    %cst_10 = arith.constant 0.000000e+00 : f32
    %15 = vector.broadcast %cst_10 : f32 to vector<64x256xf32>
    %16 = arith.maximumf %14, %15 : vector<64x256xf32>
    %17 = arith.truncf %16 : vector<64x256xf32> to vector<64x256xbf16>
    %c0_11 = arith.constant 0 : index
    %c0_12 = arith.constant 0 : index
    %18 = vector.load %arg6[%c0_11, %c0_12] : memref<256x256xbf16, #tpu.memory_space<vmem>>, vector<256x256xbf16>
    %cst_13 = arith.constant dense<0.000000e+00> : vector<64x256xf32>
    %19 = tpu.matmul %17, %18, %cst_13 {dimension_numbers = #tpu.dot_dimension_numbers<[1], [0], [0], [1], [0, 0, 1, 1], [], []>} : vector<64x256xbf16>, vector<256x256xbf16>, vector<64x256xf32> -> vector<64x256xf32>
    %c0_14 = arith.constant 0 : index
    %c0_15 = arith.constant 0 : index
    %20 = vector.load %arg7[%c0_14, %c0_15] : memref<1x256xf32, #tpu.memory_space<vmem>>, vector<1x256xf32>
    %21 = vector.broadcast %20 : vector<1x256xf32> to vector<64x256xf32>
    %22 = arith.addf %19, %21 : vector<64x256xf32>
    %cst_16 = arith.constant 0.000000e+00 : f32
    %23 = vector.broadcast %cst_16 : f32 to vector<64x256xf32>
    %24 = arith.maximumf %22, %23 : vector<64x256xf32>
    %25 = arith.truncf %24 : vector<64x256xf32> to vector<64x256xbf16>
    %c0_17 = arith.constant 0 : index
    %c0_18 = arith.constant 0 : index
    %26 = vector.load %arg8[%c0_17, %c0_18] : memref<256x128xbf16, #tpu.memory_space<vmem>>, vector<256x128xbf16>
    %cst_19 = arith.constant dense<0.000000e+00> : vector<64x128xf32>
    %27 = tpu.matmul %25, %26, %cst_19 {dimension_numbers = #tpu.dot_dimension_numbers<[1], [0], [0], [1], [0, 0, 1, 1], [], []>} : vector<64x256xbf16>, vector<256x128xbf16>, vector<64x128xf32> -> vector<64x128xf32>
    %c0_20 = arith.constant 0 : index
    %c0_21 = arith.constant 0 : index
    %28 = vector.load %arg9[%c0_20, %c0_21] : memref<1x128xf32, #tpu.memory_space<vmem>>, vector<1x128xf32>
    %29 = vector.broadcast %28 : vector<1x128xf32> to vector<64x128xf32>
    %30 = arith.addf %27, %29 : vector<64x128xf32>
    %cst_22 = arith.constant 0.000000e+00 : f32
    %31 = vector.broadcast %cst_22 : f32 to vector<64x128xf32>
    %32 = arith.maximumf %30, %31 : vector<64x128xf32>
    %33 = arith.truncf %32 : vector<64x128xf32> to vector<64x128xbf16>
    %c0_23 = arith.constant 0 : index
    %c0_24 = arith.constant 0 : index
    %34 = vector.load %arg10[%c0_23, %c0_24] : memref<128x128xbf16, #tpu.memory_space<vmem>>, vector<128x128xbf16>
    %cst_25 = arith.constant dense<0.000000e+00> : vector<64x128xf32>
    %35 = tpu.matmul %33, %34, %cst_25 {dimension_numbers = #tpu.dot_dimension_numbers<[1], [0], [0], [1], [0, 0, 1, 1], [], []>} : vector<64x128xbf16>, vector<128x128xbf16>, vector<64x128xf32> -> vector<64x128xf32>
    %c0_26 = arith.constant 0 : index
    %c0_27 = arith.constant 0 : index
    %36 = vector.load %arg11[%c0_26, %c0_27] : memref<1x128xf32, #tpu.memory_space<vmem>>, vector<1x128xf32>
    %37 = vector.broadcast %36 : vector<1x128xf32> to vector<64x128xf32>
    %38 = arith.addf %35, %37 : vector<64x128xf32>
    %39 = arith.truncf %38 : vector<64x128xf32> to vector<64x128xbf16>
    %c0_28 = arith.constant 0 : index
    %c0_29 = arith.constant 0 : index
    %40 = vector.load %arg12[%c0_28, %c0_29] : memref<64x128xbf16, #tpu.memory_space<vmem>>, vector<64x128xbf16>
    tpu.vector_store %arg12[%c0_28, %c0_29], %39 {strides = array<i32>} : memref<64x128xbf16, #tpu.memory_space<vmem>>, vector<64x128xbf16>,
    return
  }
  func.func @transform_0(%arg0: i32) -> (i32, i32) {
    %c0_i32 = arith.constant 0 : i32
    %c0_i32_0 = arith.constant 0 : i32
    return %arg0, %c0_i32 : i32, i32
  }
  func.func @transform_1(%arg0: i32) -> (i32, i32) {
    %c0_i32 = arith.constant 0 : i32
    %c0_i32_0 = arith.constant 0 : i32
    %c0_i32_1 = arith.constant 0 : i32
    return %c0_i32, %c0_i32_0 : i32, i32
  }
  func.func @transform_2(%arg0: i32) -> (i32, i32) {
    %c0_i32 = arith.constant 0 : i32
    %c0_i32_0 = arith.constant 0 : i32
    %c0_i32_1 = arith.constant 0 : i32
    return %c0_i32, %c0_i32_0 : i32, i32
  }
  func.func @transform_3(%arg0: i32) -> (i32, i32) {
    %c0_i32 = arith.constant 0 : i32
    %c0_i32_0 = arith.constant 0 : i32
    %c0_i32_1 = arith.constant 0 : i32
    return %c0_i32, %c0_i32_0 : i32, i32
  }
  func.func @transform_4(%arg0: i32) -> (i32, i32) {
    %c0_i32 = arith.constant 0 : i32
    %c0_i32_0 = arith.constant 0 : i32
    %c0_i32_1 = arith.constant 0 : i32
    return %c0_i32, %c0_i32_0 : i32, i32
  }
  func.func @transform_5(%arg0: i32) -> (i32, i32) {
    %c0_i32 = arith.constant 0 : i32
    %c0_i32_0 = arith.constant 0 : i32
    %c0_i32_1 = arith.constant 0 : i32
    return %c0_i32, %c0_i32_0 : i32, i32
  }
  func.func @transform_6(%arg0: i32) -> (i32, i32) {
    %c0_i32 = arith.constant 0 : i32
    %c0_i32_0 = arith.constant 0 : i32
    %c0_i32_1 = arith.constant 0 : i32
    return %c0_i32, %c0_i32_0 : i32, i32
  }
  func.func @transform_7(%arg0: i32) -> (i32, i32) {
    %c0_i32 = arith.constant 0 : i32
    %c0_i32_0 = arith.constant 0 : i32
    %c0_i32_1 = arith.constant 0 : i32
    return %c0_i32, %c0_i32_0 : i32, i32
  }
  func.func @transform_8(%arg0: i32) -> (i32, i32) {
    %c0_i32 = arith.constant 0 : i32
    %c0_i32_0 = arith.constant 0 : i32
    %c0_i32_1 = arith.constant 0 : i32
    return %c0_i32, %c0_i32_0 : i32, i32
  }
  func.func @transform_9(%arg0: i32) -> (i32, i32) {
    %c0_i32 = arith.constant 0 : i32
    %c0_i32_0 = arith.constant 0 : i32
    %c0_i32_1 = arith.constant 0 : i32
    return %c0_i32, %c0_i32_0 : i32, i32
  }
  func.func @transform_10(%arg0: i32) -> (i32, i32) {
    %c0_i32 = arith.constant 0 : i32
    %c0_i32_0 = arith.constant 0 : i32
    %c0_i32_1 = arith.constant 0 : i32
    return %c0_i32, %c0_i32_0 : i32, i32
  }
  func.func @transform_11(%arg0: i32) -> (i32, i32) {
    %c0_i32 = arith.constant 0 : i32
    %c0_i32_0 = arith.constant 0 : i32
    return %arg0, %c0_i32 : i32, i32
  }
}

</mosaic_0001>

<llo_original>
// kernel: deep_classifier_forward.1
$region0: #{deep_classifier_forward.1}
  #allocation0 [shape = 'u32[]', space=smem, size = 0x4, offset = 0x4, fixed_abs, tag = 'smem constant byte address 0x4 - core index']
  #allocation1 [shape = 'u32[144,128]{1,0:T(1,128)}', space=vmem, size = 0x12000, scoped, tag = 'internal scratch']
  %s0 = inlined_call_operand.hbm [shape: f32[64,256], index: 0, kind: input, shape index: {}]
  %s1 = inlined_call_operand.vmem [shape: f32[1,256], index: 1, kind: input, shape index: {}]
  %s2 = inlined_call_operand.vmem [shape: f32[1,256], index: 2, kind: input, shape index: {}]
  %s3 = inlined_call_operand.hbm [shape: bf16[256,256], index: 3, kind: input, shape index: {}]
  %s4 = inlined_call_operand.hbm [shape: f32[1,256], index: 4, kind: input, shape index: {}]
  %s5 = inlined_call_operand.hbm [shape: bf16[256,256], index: 5, kind: input, shape index: {}]
  %s6 = inlined_call_operand.vmem [shape: f32[1,256], index: 6, kind: input, shape index: {}]
  %s7 = inlined_call_operand.hbm [shape: bf16[256,128], index: 7, kind: input, shape index: {}]
  %s8 = inlined_call_operand.vmem [shape: f32[1,128], index: 8, kind: input, shape index: {}]
  %s9 = inlined_call_operand.hbm [shape: bf16[128,128], index: 9, kind: input, shape index: {}]
  %s10 = inlined_call_operand.vmem [shape: f32[1,128], index: 10, kind: input, shape index: {}]
  %s11 = inlined_call_operand.vmem [shape: bf16[64,128], index: 11, kind: output, shape index: {}]
  %s12 = sld [smem:[#allocation0]]
  $region78: #{deep_classifier_forward.1} parent=0
    _
  %s14 = ssub.s32 1, %s12
  %s15 = scalar_select 0, %s14, %s12
  $region1: #{deep_classifier_forward.1} parent=0
    #allocation2 [shape = 'u8[65536]{0}', space=vmem, size = 0x10000, scoped, tag = 'input window, operand 0, single buffered']
    #allocation3 [shape = 's32[1]{0}', space=sflag, size = 0x4, scoped, tag = 'scoped memory for deep_classifier_forward.1']
    #allocation4 [shape = 'u8[131072]{0}', space=vmem, size = 0x20000, scoped, tag = 'input window, operand 3, single buffered']
    #allocation5 [shape = 's32[1]{0}', space=sflag, size = 0x4, scoped, tag = 'scoped memory for deep_classifier_forward.1']
    #allocation6 [shape = 'u8[1024]{0}', space=vmem, size = 0x400, scoped, tag = 'input window, operand 4, single buffered']
    #allocation7 [shape = 'u8[131072]{0}', space=vmem, size = 0x20000, scoped, tag = 'input window, operand 5, single buffered']
    #allocation8 [shape = 's32[1]{0}', space=sflag, size = 0x4, scoped, tag = 'scoped memory for deep_classifier_forward.1']
    #allocation9 [shape = 'u8[65536]{0}', space=vmem, size = 0x10000, scoped, tag = 'input window, operand 7, single buffered']
    #allocation10 [shape = 'u8[32768]{0}', space=vmem, size = 0x8000, scoped, tag = 'input window, operand 9, single buffered']
    #allocation11 [shape = 's32[1]{0}', space=sflag, size = 0x4, scoped, tag = 'scoped memory for deep_classifier_forward.1']
    %16 = vsyncpa [#allocation3], 0
    %17 = vsyncpa [#allocation5], 0
    %18 = vsyncpa [#allocation8], 0
    %19 = vsyncpa [#allocation11], 0
    // Predicated region
    $region2: #{deep_classifier_forward.1} parent=1 // pred_check
      _
    $region3: #{deep_classifier_forward.1} parent=1 // pred_check_branch
      %21 = sbr.rel (0) target = $region5
    $region4: #{deep_classifier_forward.1} parent=1 // pred_region
      %s23 = ssub.s32 2048, 2048
      %24 = vsyncadd [#allocation3], %s23
      %s25 = sshll.u32 [#allocation2], 4
      %s26 = int_to_ptr.vmem [resolvable:$true] %s25
      %31 = dma.hbm_to_vmem [thread:$0]  %s0, 2048, %s26, [#allocation3], 256, 256, 16
    $region5: #{deep_classifier_forward.1} parent=1 // pred_fallthru
      _
    // Predicated region
    $region6: #{deep_classifier_forward.1} parent=1 // pred_check
      _
    $region7: #{deep_classifier_forward.1} parent=1 // pred_check_branch
      %33 = sbr.rel (0) target = $region9
    $region8: #{deep_classifier_forward.1} parent=1 // pred_region
      _
    $region9: #{deep_classifier_forward.1} parent=1 // pred_fallthru
      _
    // Predicated region
    $region10: #{deep_classifier_forward.1} parent=1 // pred_check
      _
    $region11: #{deep_classifier_forward.1} parent=1 // pred_check_branch
      %35 = sbr.rel (0) target = $region13
    $region12: #{deep_classifier_forward.1} parent=1 // pred_region
      _
    $region13: #{deep_classifier_forward.1} parent=1 // pred_fallthru
      _
    // Predicated region
    $region14: #{deep_classifier_forward.1} parent=1 // pred_check
      _
    $region15: #{deep_classifier_forward.1} parent=1 // pred_check_branch
      %37 = sbr.rel (0) target = $region17
    $region16: #{deep_classifier_forward.1} parent=1 // pred_region
      %s39 = ssub.s32 4096, 4096
      %40 = vsyncadd [#allocation5], %s39
      %s41 = sshll.u32 [#allocation4], 4
      %s42 = int_to_ptr.vmem [resolvable:$true] %s41
      %47 = dma.hbm_to_vmem [thread:$0]  %s3, 4096, %s42, [#allocation5], 128, 128, 8
    $region17: #{deep_classifier_forward.1} parent=1 // pred_fallthru
      _
    // Predicated region
    $region18: #{deep_classifier_forward.1} parent=1 // pred_check
      _
    $region19: #{deep_classifier_forward.1} parent=1 // pred_check_branch
      %49 = sbr.rel (0) target = $region21
    $region20: #{deep_classifier_forward.1} parent=1 // pred_region
      %s51 = ssub.s32 32, 32
      %52 = vsyncadd [#allocation5], %s51
      %s54 = sshll.u32 [#allocation6], 4
      %s55 = int_to_ptr.vmem [resolvable:$true] %s54
      %57 = dma.hbm_to_vmem [thread:$0]  %s4, 32, %s55, [#allocation5]
    $region21: #{deep_classifier_forward.1} parent=1 // pred_fallthru
      _
    // Predicated region
    $region22: #{deep_classifier_forward.1} parent=1 // pred_check
      _
    $region23: #{deep_classifier_forward.1} parent=1 // pred_check_branch
      %59 = sbr.rel (0) target = $region25
    $region24: #{deep_classifier_forward.1} parent=1 // pred_region
      %s61 = ssub.s32 4096, 4096
      %62 = vsyncadd [#allocation8], %s61
      %s63 = sshll.u32 [#allocation7], 4
      %s64 = int_to_ptr.vmem [resolvable:$true] %s63
      %69 = dma.hbm_to_vmem [thread:$0]  %s5, 4096, %s64, [#allocation8], 128, 128, 8
    $region25: #{deep_classifier_forward.1} parent=1 // pred_fallthru
      _
    // Predicated region
    $region26: #{deep_classifier_forward.1} parent=1 // pred_check
      _
    $region27: #{deep_classifier_forward.1} parent=1 // pred_check_branch
      %71 = sbr.rel (0) target = $region29
    $region28: #{deep_classifier_forward.1} parent=1 // pred_region
      _
    $region29: #{deep_classifier_forward.1} parent=1 // pred_fallthru
      _
    // Predicated region
    $region30: #{deep_classifier_forward.1} parent=1 // pred_check
      _
    $region31: #{deep_classifier_forward.1} parent=1 // pred_check_branch
      %73 = sbr.rel (0) target = $region33
    $region32: #{deep_classifier_forward.1} parent=1 // pred_region
      %s75 = ssub.s32 2048, 2048
      %76 = vsyncadd [#allocation8], %s75
      %s77 = sshll.u32 [#allocation9], 4
      %s78 = int_to_ptr.vmem [resolvable:$true] %s77
      %83 = dma.hbm_to_vmem [thread:$0]  %s7, 2048, %s78, [#allocation8], 64, 64, 4
    $region33: #{deep_classifier_forward.1} parent=1 // pred_fallthru
      _
    // Predicated region
    $region34: #{deep_classifier_forward.1} parent=1 // pred_check
      _
    $region35: #{deep_classifier_forward.1} parent=1 // pred_check_branch
      %85 = sbr.rel (0) target = $region37
    $region36: #{deep_classifier_forward.1} parent=1 // pred_region
      _
    $region37: #{deep_classifier_forward.1} parent=1 // pred_fallthru
      _
    // Predicated region
    $region38: #{deep_classifier_forward.1} parent=1 // pred_check
      _
    $region39: #{deep_classifier_forward.1} parent=1 // pred_check_branch
      %87 = sbr.rel (0) target = $region41
    $region40: #{deep_classifier_forward.1} parent=1 // pred_region
      %s89 = ssub.s32 1024, 1024
      %90 = vsyncadd [#allocation11], %s89
      %s91 = sshll.u32 [#allocation10], 4
      %s92 = int_to_ptr.vmem [resolvable:$true] %s91
      %97 = dma.hbm_to_vmem [thread:$0]  %s9, 1024, %s92, [#allocation11], 64, 64, 4
    $region41: #{deep_classifier_forward.1} parent=1 // pred_fallthru
      _
    // Predicated region
    $region42: #{deep_classifier_forward.1} parent=1 // pred_check
      _
    $region43: #{deep_classifier_forward.1} parent=1 // pred_check_branch
      %99 = sbr.rel (0) target = $region45
    $region44: #{deep_classifier_forward.1} parent=1 // pred_region
      _
    $region45: #{deep_classifier_forward.1} parent=1 // pred_fallthru
      _
    // Predicated region
    $region46: #{deep_classifier_forward.1} parent=1 // pred_check
      _
    $region47: #{deep_classifier_forward.1} parent=1 // pred_check_branch
      %101 = sbr.rel (0) target = $region49
    $region48: #{deep_classifier_forward.1} parent=1 // pred_region
      %102 = dma.done [#allocation3], 2048
    $region49: #{deep_classifier_forward.1} parent=1 // pred_fallthru
      _
    // Predicated region
    $region50: #{deep_classifier_forward.1} parent=1 // pred_check
      _
    $region51: #{deep_classifier_forward.1} parent=1 // pred_check_branch
      %104 = sbr.rel (0) target = $region53
    $region52: #{deep_classifier_forward.1} parent=1 // pred_region
      %105 = dma.done [#allocation5], 4096
    $region53: #{deep_classifier_forward.1} parent=1 // pred_fallthru
      _
    // Predicated region
    $region54: #{deep_classifier_forward.1} parent=1 // pred_check
      _
    $region55: #{deep_classifier_forward.1} parent=1 // pred_check_branch
      %107 = sbr.rel (0) target = $region57
    $region56: #{deep_classifier_forward.1} parent=1 // pred_region
      %108 = dma.done [#allocation5], 32
    $region57: #{deep_classifier_forward.1} parent=1 // pred_fallthru
      _
    // Predicated region
    $region58: #{deep_classifier_forward.1} parent=1 // pred_check
      _
    $region59: #{deep_classifier_forward.1} parent=1 // pred_check_branch
      %110 = sbr.rel (0) target = $region61
    $region60: #{deep_classifier_forward.1} parent=1 // pred_region
      %111 = dma.done [#allocation8], 4096
    $region61: #{deep_classifier_forward.1} parent=1 // pred_fallthru
      _
    // Predicated region
    $region62: #{deep_classifier_forward.1} parent=1 // pred_check
      _
    $region63: #{deep_classifier_forward.1} parent=1 // pred_check_branch
      %113 = sbr.rel (0) target = $region65
    $region64: #{deep_classifier_forward.1} parent=1 // pred_region
      %114 = dma.done [#allocation8], 2048
    $region65: #{deep_classifier_forward.1} parent=1 // pred_fallthru
      _
    // Predicated region
    $region66: #{deep_classifier_forward.1} parent=1 // pred_check
      _
    $region67: #{deep_classifier_forward.1} parent=1 // pred_check_branch
      %116 = sbr.rel (0) target = $region69
    $region68: #{deep_classifier_forward.1} parent=1 // pred_region
      %117 = dma.done [#allocation11], 1024
    $region69: #{deep_classifier_forward.1} parent=1 // pred_fallthru
      _
    %v119 = vld [vmem:[#allocation2] sm:$0xff]
    %v120 = vld [vmem:[#allocation2 + $0x8] sm:$0xff]
    %v121 = vld [vmem:[#allocation2 + $0x10] sm:$0xff]
    %v122 = vld [vmem:[#allocation2 + $0x18] sm:$0xff]
    %v123 = vld [vmem:[#allocation2 + $0x20] sm:$0xff]
    %v124 = vld [vmem:[#allocation2 + $0x28] sm:$0xff]
    %v125 = vld [vmem:[#allocation2 + $0x30] sm:$0xff]
    %v126 = vld [vmem:[#allocation2 + $0x38] sm:$0xff]
    %v127 = vld [vmem:[#allocation2 + $0x40] sm:$0xff]
    %v128 = vld [vmem:[#allocation2 + $0x48] sm:$0xff]
    %v129 = vld [vmem:[#allocation2 + $0x50] sm:$0xff]
    %v130 = vld [vmem:[#allocation2 + $0x58] sm:$0xff]
    %v131 = vld [vmem:[#allocation2 + $0x60] sm:$0xff]
    %v132 = vld [vmem:[#allocation2 + $0x68] sm:$0xff]
    %v133 = vld [vmem:[#allocation2 + $0x70] sm:$0xff]
    %v134 = vld [vmem:[#allocation2 + $0x78] sm:$0xff]
    %v135 = vld [vmem:[%s1] sm:$0x3]
    %v137 = vlaneseq
    %v138 = vshrl.u32 %v137, 7
    %v139 = vsub.s32 0, %v138
    %v140 = vrot.slane %v135, %v139
    %v141 = vlaneseq
    %v142 = vshrl.u32 %v141, 7
    %v143 = vsub.s32 1, %v142
    %v144 = vrot.slane %v135, %v143
    %v147 = vmul.f32 %v119, %v140
    %v148 = vmul.f32 %v120, %v144
    %v149 = vmul.f32 %v121, %v140
    %v150 = vmul.f32 %v122, %v144
    %v151 = vmul.f32 %v123, %v140
    %v152 = vmul.f32 %v124, %v144
    %v153 = vmul.f32 %v125, %v140
    %v154 = vmul.f32 %v126, %v144
    %v155 = vmul.f32 %v127, %v140
    %v156 = vmul.f32 %v128, %v144
    %v157 = vmul.f32 %v129, %v140
    %v158 = vmul.f32 %v130, %v144
    %v159 = vmul.f32 %v131, %v140
    %v160 = vmul.f32 %v132, %v144
    %v161 = vmul.f32 %v133, %v140
    %v162 = vmul.f32 %v134, %v144
    %v163 = vld [vmem:[%s2] sm:$0x3]
    %v165 = vlaneseq
    %v166 = vshrl.u32 %v165, 7
    %v167 = vsub.s32 0, %v166
    %v168 = vrot.slane %v163, %v167
    %v169 = vlaneseq
    %v170 = vshrl.u32 %v169, 7
    %v171 = vsub.s32 1, %v170
    %v172 = vrot.slane %v163, %v171
    %v175 = vadd.f32 %v147, %v168
    %v176 = vadd.f32 %v148, %v172
    %v177 = vadd.f32 %v149, %v168
    %v178 = vadd.f32 %v150, %v172
    %v179 = vadd.f32 %v151, %v168
    %v180 = vadd.f32 %v152, %v172
    %v181 = vadd.f32 %v153, %v168
    %v182 = vadd.f32 %v154, %v172
    %v183 = vadd.f32 %v155, %v168
    %v184 = vadd.f32 %v156, %v172
    %v185 = vadd.f32 %v157, %v168
    %v186 = vadd.f32 %v158, %v172
    %v187 = vadd.f32 %v159, %v168
    %v188 = vadd.f32 %v160, %v172
    %v189 = vadd.f32 %v161, %v168
    %v190 = vadd.f32 %v162, %v172
    %v191 = vmax.f32 %v175, 0.0
    %v192 = vmax.f32 %v176, 0.0
    %v193 = vmax.f32 %v177, 0.0
    %v194 = vmax.f32 %v178, 0.0
    %v195 = vmax.f32 %v179, 0.0
    %v196 = vmax.f32 %v180, 0.0
    %v197 = vmax.f32 %v181, 0.0
    %v198 = vmax.f32 %v182, 0.0
    %v199 = vmax.f32 %v183, 0.0
    %v200 = vmax.f32 %v184, 0.0
    %v201 = vmax.f32 %v185, 0.0
    %v202 = vmax.f32 %v186, 0.0
    %v203 = vmax.f32 %v187, 0.0
    %v204 = vmax.f32 %v188, 0.0
    %v205 = vmax.f32 %v189, 0.0
    %v206 = vmax.f32 %v190, 0.0
    %v207 = vpack.c.bf16 %v193, %v191
    %v208 = vpack.c.bf16 %v194, %v192
    %v209 = vpack.c.bf16 %v197, %v195
    %v210 = vpack.c.bf16 %v198, %v196
    %v211 = vpack.c.bf16 %v201, %v199
    %v212 = vpack.c.bf16 %v202, %v200
    %v213 = vpack.c.bf16 %v205, %v203
    %v214 = vpack.c.bf16 %v206, %v204
    %v215 = vld [vmem:[#allocation4] sm:$0xff]
    %v216 = vld [vmem:[#allocation4 + $0x8] sm:$0xff]
    %v217 = vld [vmem:[#allocation4 + $0x10] sm:$0xff]
    %v218 = vld [vmem:[#allocation4 + $0x18] sm:$0xff]
    %v219 = vld [vmem:[#allocation4 + $0x20] sm:$0xff]
    %v220 = vld [vmem:[#allocation4 + $0x28] sm:$0xff]
    %v221 = vld [vmem:[#allocation4 + $0x30] sm:$0xff]
    %v222 = vld [vmem:[#allocation4 + $0x38] sm:$0xff]
    %v223 = vld [vmem:[#allocation4 + $0x40] sm:$0xff]
    %v224 = vld [vmem:[#allocation4 + $0x48] sm:$0xff]
    %v225 = vld [vmem:[#allocation4 + $0x50] sm:$0xff]
    %v226 = vld [vmem:[#allocation4 + $0x58] sm:$0xff]
    %v227 = vld [vmem:[#allocation4 + $0x60] sm:$0xff]
    %v228 = vld [vmem:[#allocation4 + $0x68] sm:$0xff]
    %v229 = vld [vmem:[#allocation4 + $0x70] sm:$0xff]
    %v230 = vld [vmem:[#allocation4 + $0x78] sm:$0xff]
    %v231 = vld [vmem:[#allocation4 + $0x80] sm:$0xff]
    %v232 = vld [vmem:[#allocation4 + $0x88] sm:$0xff]
    %v233 = vld [vmem:[#allocation4 + $0x90] sm:$0xff]
    %v234 = vld [vmem:[#allocation4 + $0x98] sm:$0xff]
    %v235 = vld [vmem:[#allocation4 + $0xa0] sm:$0xff]
    %v236 = vld [vmem:[#allocation4 + $0xa8] sm:$0xff]
    %v237 = vld [vmem:[#allocation4 + $0xb0] sm:$0xff]
    %v238 = vld [vmem:[#allocation4 + $0xb8] sm:$0xff]
    %v239 = vld [vmem:[#allocation4 + $0xc0] sm:$0xff]
    %v240 = vld [vmem:[#allocation4 + $0xc8] sm:$0xff]
    %v241 = vld [vmem:[#allocation4 + $0xd0] sm:$0xff]
    %v242 = vld [vmem:[#allocation4 + $0xd8] sm:$0xff]
    %v243 = vld [vmem:[#allocation4 + $0xe0] sm:$0xff]
    %v244 = vld [vmem:[#allocation4 + $0xe8] sm:$0xff]
    %v245 = vld [vmem:[#allocation4 + $0xf0] sm:$0xff]
    %v246 = vld [vmem:[#allocation4 + $0xf8] sm:$0xff]
    %v247 = vld [vmem:[#allocation6] sm:$0x3]
    %v249 = vlaneseq
    %v250 = vshrl.u32 %v249, 7
    %v251 = vsub.s32 0, %v250
    %v252 = vrot.slane %v247, %v251
    %v253 = vlaneseq
    %v254 = vshrl.u32 %v253, 7
    %v255 = vsub.s32 1, %v254
    %v256 = vrot.slane %v247, %v255
    %v291 = vunpack.c.l.b16 %v215
    %v292 = vunpack.c.h.b16 %v215
    %v293 = vunpack.c.l.b16 %v216
    %v294 = vunpack.c.h.b16 %v216
    %v295 = vunpack.c.l.b16 %v217
    %v296 = vunpack.c.h.b16 %v217
    %v297 = vunpack.c.l.b16 %v218
    %v298 = vunpack.c.h.b16 %v218
    %v299 = vunpack.c.l.b16 %v219
    %v300 = vunpack.c.h.b16 %v219
    %v301 = vunpack.c.l.b16 %v220
    %v302 = vunpack.c.h.b16 %v220
    %v303 = vunpack.c.l.b16 %v221
    %v304 = vunpack.c.h.b16 %v221
    %v305 = vunpack.c.l.b16 %v222
    %v306 = vunpack.c.h.b16 %v222
    %v307 = vunpack.c.l.b16 %v223
    %v308 = vunpack.c.h.b16 %v223
    %v309 = vunpack.c.l.b16 %v224
    %v310 = vunpack.c.h.b16 %v224
    %v311 = vunpack.c.l.b16 %v225
    %v312 = vunpack.c.h.b16 %v225
    %v313 = vunpack.c.l.b16 %v226
    %v314 = vunpack.c.h.b16 %v226
    %v315 = vunpack.c.l.b16 %v227
    %v316 = vunpack.c.h.b16 %v227
    %v317 = vunpack.c.l.b16 %v228
    %v318 = vunpack.c.h.b16 %v228
    %v319 = vunpack.c.l.b16 %v229
    %v320 = vunpack.c.h.b16 %v229
    %v321 = vunpack.c.l.b16 %v230
    %v322 = vunpack.c.h.b16 %v230
    %v323 = vunpack.c.l.b16 %v231
    %v324 = vunpack.c.h.b16 %v231
    %v325 = vunpack.c.l.b16 %v232
    %v326 = vunpack.c.h.b16 %v232
    %v327 = vunpack.c.l.b16 %v233
    %v328 = vunpack.c.h.b16 %v233
    %v329 = vunpack.c.l.b16 %v234
    %v330 = vunpack.c.h.b16 %v234
    %v331 = vunpack.c.l.b16 %v235
    %v332 = vunpack.c.h.b16 %v235
    %v333 = vunpack.c.l.b16 %v236
    %v334 = vunpack.c.h.b16 %v236
    %v335 = vunpack.c.l.b16 %v237
    %v336 = vunpack.c.h.b16 %v237
    %v337 = vunpack.c.l.b16 %v238
    %v338 = vunpack.c.h.b16 %v238
    %v339 = vunpack.c.l.b16 %v239
    %v340 = vunpack.c.h.b16 %v239
    %v341 = vunpack.c.l.b16 %v240
    %v342 = vunpack.c.h.b16 %v240
    %v343 = vunpack.c.l.b16 %v241
    %v344 = vunpack.c.h.b16 %v241
    %v345 = vunpack.c.l.b16 %v242
    %v346 = vunpack.c.h.b16 %v242
    %v347 = vunpack.c.l.b16 %v243
    %v348 = vunpack.c.h.b16 %v243
    %v349 = vunpack.c.l.b16 %v244
    %v350 = vunpack.c.h.b16 %v244
    %v351 = vunpack.c.l.b16 %v245
    %v352 = vunpack.c.h.b16 %v245
    %v353 = vunpack.c.l.b16 %v246
    %v354 = vunpack.c.h.b16 %v246
    %v355 = vpack.c.b16 %v293, %v291
    %v356 = vpack.c.b16 %v294, %v292
    %v357 = vpack.c.b16 %v297, %v295
    %v358 = vpack.c.b16 %v298, %v296
    %v359 = vpack.c.b16 %v301, %v299
    %v360 = vpack.c.b16 %v302, %v300
    %v361 = vpack.c.b16 %v305, %v303
    %v362 = vpack.c.b16 %v306, %v304
    %v363 = vpack.c.b16 %v309, %v307
    %v364 = vpack.c.b16 %v310, %v308
    %v365 = vpack.c.b16 %v313, %v311
    %v366 = vpack.c.b16 %v314, %v312
    %v367 = vpack.c.b16 %v317, %v315
    %v368 = vpack.c.b16 %v318, %v316
    %v369 = vpack.c.b16 %v321, %v319
    %v370 = vpack.c.b16 %v322, %v320
    %v371 = vpack.c.b16 %v325, %v323
    %v372 = vpack.c.b16 %v326, %v324
    %v373 = vpack.c.b16 %v329, %v327
    %v374 = vpack.c.b16 %v330, %v328
    %v375 = vpack.c.b16 %v333, %v331
    %v376 = vpack.c.b16 %v334, %v332
    %v377 = vpack.c.b16 %v337, %v335
    %v378 = vpack.c.b16 %v338, %v336
    %v379 = vpack.c.b16 %v341, %v339
    %v380 = vpack.c.b16 %v342, %v340
    %v381 = vpack.c.b16 %v345, %v343
    %v382 = vpack.c.b16 %v346, %v344
    %v383 = vpack.c.b16 %v349, %v347
    %v384 = vpack.c.b16 %v350, %v348
    %v385 = vpack.c.b16 %v353, %v351
    %v386 = vpack.c.b16 %v354, %v352
    %419 = vmatprep.subr.bf16.mxu0 %v356
    %420 = vmatpush1.bf16.msra.mxu0 %v355
    %421 = vmatprep.subr.bf16.mxu0 %v358
    %422 = vmatpush1.bf16.msra.mxu0 %v357
    %423 = vmatprep.subr.bf16.mxu0 %v360
    %424 = vmatpush1.bf16.msra.mxu0 %v359
    %425 = vmatprep.subr.bf16.mxu0 %v362
    %426 = vmatpush1.bf16.msra.mxu0 %v361
    %427 = vmatprep.subr.bf16.mxu0 %v364
    %428 = vmatpush1.bf16.msra.mxu0 %v363
    %429 = vmatprep.subr.bf16.mxu0 %v366
    %430 = vmatpush1.bf16.msra.mxu0 %v365
    %431 = vmatprep.subr.bf16.mxu0 %v368
    %432 = vmatpush1.bf16.msra.mxu0 %v367
    %433 = vmatprep.subr.bf16.mxu0 %v370
    %434 = vmatpush1.bf16.msra.mxu0 %v369
    %435 = vmatprep.subr.bf16.mxu0 %v372
    %436 = vmatpush1.bf16.msra.mxu0 %v371
    %437 = vmatprep.subr.bf16.mxu0 %v374
    %438 = vmatpush1.bf16.msra.mxu0 %v373
    %439 = vmatprep.subr.bf16.mxu0 %v376
    %440 = vmatpush1.bf16.msra.mxu0 %v375
    %441 = vmatprep.subr.bf16.mxu0 %v378
    %442 = vmatpush1.bf16.msra.mxu0 %v377
    %443 = vmatprep.subr.bf16.mxu0 %v380
    %444 = vmatpush1.bf16.msra.mxu0 %v379
    %445 = vmatprep.subr.bf16.mxu0 %v382
    %446 = vmatpush1.bf16.msra.mxu0 %v381
    %447 = vmatprep.subr.bf16.mxu0 %v384
    %448 = vmatpush1.bf16.msra.mxu0 %v383
    %449 = vmatprep.subr.bf16.mxu0 %v386
    %450 = vmatpush1.bf16.msra.mxu0 %v385
    %451 = vmatprep.mubr.bf16.mxu0 %v208
    %452 = vmatmul.mubr.bf16.gmra.mrb[0].mxu0 %v207
    %v453 = vpop.f32.mrb[0].mxu0
    %v454 = vadd.f32 %v252, %v453
    %v455 = vpop.f32.mrb[0].mxu0
    %v456 = vadd.f32 %v256, %v455
    %v457 = vpop.f32.mrb[0].mxu0
    %v458 = vadd.f32 %v252, %v457
    %v459 = vpop.f32.mrb[0].mxu0
    %v460 = vadd.f32 %v256, %v459
    %461 = vmatprep.mubr.bf16.mxu0 %v210
    %462 = vmatmul.mubr.bf16.gmra.mrb[0].mxu0 %v209
    %v463 = vpop.f32.mrb[0].mxu0
    %v464 = vadd.f32 %v252, %v463
    %v465 = vpop.f32.mrb[0].mxu0
    %v466 = vadd.f32 %v256, %v465
    %v467 = vpop.f32.mrb[0].mxu0
    %v468 = vadd.f32 %v252, %v467
    %v469 = vpop.f32.mrb[0].mxu0
    %v470 = vadd.f32 %v256, %v469
    %471 = vmatprep.mubr.bf16.mxu0 %v212
    %472 = vmatmul.mubr.bf16.gmra.mrb[0].mxu0 %v211
    %v473 = vpop.f32.mrb[0].mxu0
    %v474 = vadd.f32 %v252, %v473
    %v475 = vpop.f32.mrb[0].mxu0
    %v476 = vadd.f32 %v256, %v475
    %v477 = vpop.f32.mrb[0].mxu0
    %v478 = vadd.f32 %v252, %v477
    %v479 = vpop.f32.mrb[0].mxu0
    %v480 = vadd.f32 %v256, %v479
    %481 = vmatprep.mubr.bf16.mxu0 %v214
    %482 = vmatmul.mubr.bf16.gmra.mrb[0].mxu0 %v213
    %v483 = vpop.f32.mrb[0].mxu0
    %v484 = vadd.f32 %v252, %v483
    %v485 = vpop.f32.mrb[0].mxu0
    %v486 = vadd.f32 %v256, %v485
    %v487 = vpop.f32.mrb[0].mxu0
    %v488 = vadd.f32 %v252, %v487
    %v489 = vpop.f32.mrb[0].mxu0
    %v490 = vadd.f32 %v256, %v489
    %491 = vdwg.mxu0
    %v492 = vmax.f32 %v454, 0.0
    %v493 = vmax.f32 %v456, 0.0
    %v494 = vmax.f32 %v458, 0.0
    %v495 = vmax.f32 %v460, 0.0
    %v496 = vmax.f32 %v464, 0.0
    %v497 = vmax.f32 %v466, 0.0
    %v498 = vmax.f32 %v468, 0.0
    %v499 = vmax.f32 %v470, 0.0
    %v500 = vmax.f32 %v474, 0.0
    %v501 = vmax.f32 %v476, 0.0
    %v502 = vmax.f32 %v478, 0.0
    %v503 = vmax.f32 %v480, 0.0
    %v504 = vmax.f32 %v484, 0.0
    %v505 = vmax.f32 %v486, 0.0
    %v506 = vmax.f32 %v488, 0.0
    %v507 = vmax.f32 %v490, 0.0
    %v508 = vpack.c.bf16 %v494, %v492
    %v509 = vpack.c.bf16 %v495, %v493
    %v510 = vpack.c.bf16 %v498, %v496
    %v511 = vpack.c.bf16 %v499, %v497
    %v512 = vpack.c.bf16 %v502, %v500
    %v513 = vpack.c.bf16 %v503, %v501
    %v514 = vpack.c.bf16 %v506, %v504
    %v515 = vpack.c.bf16 %v507, %v505
    %v516 = vld [vmem:[#allocation7] sm:$0xff]
    %v517 = vld [vmem:[#allocation7 + $0x8] sm:$0xff]
    %v518 = vld [vmem:[#allocation7 + $0x10] sm:$0xff]
    %v519 = vld [vmem:[#allocation7 + $0x18] sm:$0xff]
    %v520 = vld [vmem:[#allocation7 + $0x20] sm:$0xff]
    %v521 = vld [vmem:[#allocation7 + $0x28] sm:$0xff]
    %v522 = vld [vmem:[#allocation7 + $0x30] sm:$0xff]
    %v523 = vld [vmem:[#allocation7 + $0x38] sm:$0xff]
    %v524 = vld [vmem:[#allocation7 + $0x40] sm:$0xff]
    %v525 = vld [vmem:[#allocation7 + $0x48] sm:$0xff]
    %v526 = vld [vmem:[#allocation7 + $0x50] sm:$0xff]
    %v527 = vld [vmem:[#allocation7 + $0x58] sm:$0xff]
    %v528 = vld [vmem:[#allocation7 + $0x60] sm:$0xff]
    %v529 = vld [vmem:[#allocation7 + $0x68] sm:$0xff]
    %v530 = vld [vmem:[#allocation7 + $0x70] sm:$0xff]
    %v531 = vld [vmem:[#allocation7 + $0x78] sm:$0xff]
    %v532 = vld [vmem:[#allocation7 + $0x80] sm:$0xff]
    %v533 = vld [vmem:[#allocation7 + $0x88] sm:$0xff]
    %v534 = vld [vmem:[#allocation7 + $0x90] sm:$0xff]
    %v535 = vld [vmem:[#allocation7 + $0x98] sm:$0xff]
    %v536 = vld [vmem:[#allocation7 + $0xa0] sm:$0xff]
    %v537 = vld [vmem:[#allocation7 + $0xa8] sm:$0xff]
    %v538 = vld [vmem:[#allocation7 + $0xb0] sm:$0xff]
    %v539 = vld [vmem:[#allocation7 + $0xb8] sm:$0xff]
    %v540 = vld [vmem:[#allocation7 + $0xc0] sm:$0xff]
    %v541 = vld [vmem:[#allocation7 + $0xc8] sm:$0xff]
    %v542 = vld [vmem:[#allocation7 + $0xd0] sm:$0xff]
    %v543 = vld [vmem:[#allocation7 + $0xd8] sm:$0xff]
    %v544 = vld [vmem:[#allocation7 + $0xe0] sm:$0xff]
    %v545 = vld [vmem:[#allocation7 + $0xe8] sm:$0xff]
    %v546 = vld [vmem:[#allocation7 + $0xf0] sm:$0xff]
    %v547 = vld [vmem:[#allocation7 + $0xf8] sm:$0xff]
    %v548 = vld [vmem:[%s6] sm:$0x3]
    %v550 = vlaneseq
    %v551 = vshrl.u32 %v550, 7
    %v552 = vsub.s32 0, %v551
    %v553 = vrot.slane %v548, %v552
    %v554 = vlaneseq
    %v555 = vshrl.u32 %v554, 7
    %v556 = vsub.s32 1, %v555
    %v557 = vrot.slane %v548, %v556
    %v592 = vunpack.c.l.b16 %v516
    %v593 = vunpack.c.h.b16 %v516
    %v594 = vunpack.c.l.b16 %v517
    %v595 = vunpack.c.h.b16 %v517
    %v596 = vunpack.c.l.b16 %v518
    %v597 = vunpack.c.h.b16 %v518
    %v598 = vunpack.c.l.b16 %v519
    %v599 = vunpack.c.h.b16 %v519
    %v600 = vunpack.c.l.b16 %v520
    %v601 = vunpack.c.h.b16 %v520
    %v602 = vunpack.c.l.b16 %v521
    %v603 = vunpack.c.h.b16 %v521
    %v604 = vunpack.c.l.b16 %v522
    %v605 = vunpack.c.h.b16 %v522
    %v606 = vunpack.c.l.b16 %v523
    %v607 = vunpack.c.h.b16 %v523
    %v608 = vunpack.c.l.b16 %v524
    %v609 = vunpack.c.h.b16 %v524
    %v610 = vunpack.c.l.b16 %v525
    %v611 = vunpack.c.h.b16 %v525
    %v612 = vunpack.c.l.b16 %v526
    %v613 = vunpack.c.h.b16 %v526
    %v614 = vunpack.c.l.b16 %v527
    %v615 = vunpack.c.h.b16 %v527
    %v616 = vunpack.c.l.b16 %v528
    %v617 = vunpack.c.h.b16 %v528
    %v618 = vunpack.c.l.b16 %v529
    %v619 = vunpack.c.h.b16 %v529
    %v620 = vunpack.c.l.b16 %v530
    %v621 = vunpack.c.h.b16 %v530
    %v622 = vunpack.c.l.b16 %v531
    %v623 = vunpack.c.h.b16 %v531
    %v624 = vunpack.c.l.b16 %v532
    %v625 = vunpack.c.h.b16 %v532
    %v626 = vunpack.c.l.b16 %v533
    %v627 = vunpack.c.h.b16 %v533
    %v628 = vunpack.c.l.b16 %v534
    %v629 = vunpack.c.h.b16 %v534
    %v630 = vunpack.c.l.b16 %v535
    %v631 = vunpack.c.h.b16 %v535
    %v632 = vunpack.c.l.b16 %v536
    %v633 = vunpack.c.h.b16 %v536
    %v634 = vunpack.c.l.b16 %v537
    %v635 = vunpack.c.h.b16 %v537
    %v636 = vunpack.c.l.b16 %v538
    %v637 = vunpack.c.h.b16 %v538
    %v638 = vunpack.c.l.b16 %v539
    %v639 = vunpack.c.h.b16 %v539
    %v640 = vunpack.c.l.b16 %v540
    %v641 = vunpack.c.h.b16 %v540
    %v642 = vunpack.c.l.b16 %v541
    %v643 = vunpack.c.h.b16 %v541
    %v644 = vunpack.c.l.b16 %v542
    %v645 = vunpack.c.h.b16 %v542
    %v646 = vunpack.c.l.b16 %v543
    %v647 = vunpack.c.h.b16 %v543
    %v648 = vunpack.c.l.b16 %v544
    %v649 = vunpack.c.h.b16 %v544
    %v650 = vunpack.c.l.b16 %v545
    %v651 = vunpack.c.h.b16 %v545
    %v652 = vunpack.c.l.b16 %v546
    %v653 = vunpack.c.h.b16 %v546
    %v654 = vunpack.c.l.b16 %v547
    %v655 = vunpack.c.h.b16 %v547
    %v656 = vpack.c.b16 %v594, %v592
    %v657 = vpack.c.b16 %v595, %v593
    %v658 = vpack.c.b16 %v598, %v596
    %v659 = vpack.c.b16 %v599, %v597
    %v660 = vpack.c.b16 %v602, %v600
    %v661 = vpack.c.b16 %v603, %v601
    %v662 = vpack.c.b16 %v606, %v604
    %v663 = vpack.c.b16 %v607, %v605
    %v664 = vpack.c.b16 %v610, %v608
    %v665 = vpack.c.b16 %v611, %v609
    %v666 = vpack.c.b16 %v614, %v612
    %v667 = vpack.c.b16 %v615, %v613
    %v668 = vpack.c.b16 %v618, %v616
    %v669 = vpack.c.b16 %v619, %v617
    %v670 = vpack.c.b16 %v622, %v620
    %v671 = vpack.c.b16 %v623, %v621
    %v672 = vpack.c.b16 %v626, %v624
    %v673 = vpack.c.b16 %v627, %v625
    %v674 = vpack.c.b16 %v630, %v628
    %v675 = vpack.c.b16 %v631, %v629
    %v676 = vpack.c.b16 %v634, %v632
    %v677 = vpack.c.b16 %v635, %v633
    %v678 = vpack.c.b16 %v638, %v636
    %v679 = vpack.c.b16 %v639, %v637
    %v680 = vpack.c.b16 %v642, %v640
    %v681 = vpack.c.b16 %v643, %v641
    %v682 = vpack.c.b16 %v646, %v644
    %v683 = vpack.c.b16 %v647, %v645
    %v684 = vpack.c.b16 %v650, %v648
    %v685 = vpack.c.b16 %v651, %v649
    %v686 = vpack.c.b16 %v654, %v652
    %v687 = vpack.c.b16 %v655, %v653
    %720 = vmatprep.subr.bf16.mxu0 %v657
    %721 = vmatpush1.bf16.msra.mxu0 %v656
    %722 = vmatprep.subr.bf16.mxu0 %v659
    %723 = vmatpush1.bf16.msra.mxu0 %v658
    %724 = vmatprep.subr.bf16.mxu0 %v661
    %725 = vmatpush1.bf16.msra.mxu0 %v660
    %726 = vmatprep.subr.bf16.mxu0 %v663
    %727 = vmatpush1.bf16.msra.mxu0 %v662
    %728 = vmatprep.subr.bf16.mxu0 %v665
    %729 = vmatpush1.bf16.msra.mxu0 %v664
    %730 = vmatprep.subr.bf16.mxu0 %v667
    %731 = vmatpush1.bf16.msra.mxu0 %v666
    %732 = vmatprep.subr.bf16.mxu0 %v669
    %733 = vmatpush1.bf16.msra.mxu0 %v668
    %734 = vmatprep.subr.bf16.mxu0 %v671
    %735 = vmatpush1.bf16.msra.mxu0 %v670
    %736 = vmatprep.subr.bf16.mxu0 %v673
    %737 = vmatpush1.bf16.msra.mxu0 %v672
    %738 = vmatprep.subr.bf16.mxu0 %v675
    %739 = vmatpush1.bf16.msra.mxu0 %v674
    %740 = vmatprep.subr.bf16.mxu0 %v677
    %741 = vmatpush1.bf16.msra.mxu0 %v676
    %742 = vmatprep.subr.bf16.mxu0 %v679
    %743 = vmatpush1.bf16.msra.mxu0 %v678
    %744 = vmatprep.subr.bf16.mxu0 %v681
    %745 = vmatpush1.bf16.msra.mxu0 %v680
    %746 = vmatprep.subr.bf16.mxu0 %v683
    %747 = vmatpush1.bf16.msra.mxu0 %v682
    %748 = vmatprep.subr.bf16.mxu0 %v685
    %749 = vmatpush1.bf16.msra.mxu0 %v684
    %750 = vmatprep.subr.bf16.mxu0 %v687
    %751 = vmatpush1.bf16.msra.mxu0 %v686
    %752 = vmatprep.mubr.bf16.mxu0 %v509
    %753 = vmatmul.mubr.bf16.gmra.mrb[0].mxu0 %v508
    %v754 = vpop.f32.mrb[0].mxu0
    %v755 = vadd.f32 %v553, %v754
    %v756 = vpop.f32.mrb[0].mxu0
    %v757 = vadd.f32 %v557, %v756
    %v758 = vpop.f32.mrb[0].mxu0
    %v759 = vadd.f32 %v553, %v758
    %v760 = vpop.f32.mrb[0].mxu0
    %v761 = vadd.f32 %v557, %v760
    %762 = vmatprep.mubr.bf16.mxu0 %v511
    %763 = vmatmul.mubr.bf16.gmra.mrb[0].mxu0 %v510
    %v764 = vpop.f32.mrb[0].mxu0
    %v765 = vadd.f32 %v553, %v764
    %v766 = vpop.f32.mrb[0].mxu0
    %v767 = vadd.f32 %v557, %v766
    %v768 = vpop.f32.mrb[0].mxu0
    %v769 = vadd.f32 %v553, %v768
    %v770 = vpop.f32.mrb[0].mxu0
    %v771 = vadd.f32 %v557, %v770
    %772 = vmatprep.mubr.bf16.mxu0 %v513
    %773 = vmatmul.mubr.bf16.gmra.mrb[0].mxu0 %v512
    %v774 = vpop.f32.mrb[0].mxu0
    %v775 = vadd.f32 %v553, %v774
    %v776 = vpop.f32.mrb[0].mxu0
    %v777 = vadd.f32 %v557, %v776
    %v778 = vpop.f32.mrb[0].mxu0
    %v779 = vadd.f32 %v553, %v778
    %v780 = vpop.f32.mrb[0].mxu0
    %v781 = vadd.f32 %v557, %v780
    %782 = vmatprep.mubr.bf16.mxu0 %v515
    %783 = vmatmul.mubr.bf16.gmra.mrb[0].mxu0 %v514
    %v784 = vpop.f32.mrb[0].mxu0
    %v785 = vadd.f32 %v553, %v784
    %v786 = vpop.f32.mrb[0].mxu0
    %v787 = vadd.f32 %v557, %v786
    %v788 = vpop.f32.mrb[0].mxu0
    %v789 = vadd.f32 %v553, %v788
    %v790 = vpop.f32.mrb[0].mxu0
    %v791 = vadd.f32 %v557, %v790
    %792 = vdwg.mxu0
    %v793 = vmax.f32 %v755, 0.0
    %v794 = vmax.f32 %v757, 0.0
    %v795 = vmax.f32 %v759, 0.0
    %v796 = vmax.f32 %v761, 0.0
    %v797 = vmax.f32 %v765, 0.0
    %v798 = vmax.f32 %v767, 0.0
    %v799 = vmax.f32 %v769, 0.0
    %v800 = vmax.f32 %v771, 0.0
    %v801 = vmax.f32 %v775, 0.0
    %v802 = vmax.f32 %v777, 0.0
    %v803 = vmax.f32 %v779, 0.0
    %v804 = vmax.f32 %v781, 0.0
    %v805 = vmax.f32 %v785, 0.0
    %v806 = vmax.f32 %v787, 0.0
    %v807 = vmax.f32 %v789, 0.0
    %v808 = vmax.f32 %v791, 0.0
    %v809 = vpack.c.bf16 %v795, %v793
    %v810 = vpack.c.bf16 %v796, %v794
    %v811 = vpack.c.bf16 %v799, %v797
    %v812 = vpack.c.bf16 %v800, %v798
    %v813 = vpack.c.bf16 %v803, %v801
    %v814 = vpack.c.bf16 %v804, %v802
    %v815 = vpack.c.bf16 %v807, %v805
    %v816 = vpack.c.bf16 %v808, %v806
    %v817 = vld [vmem:[#allocation9] sm:$0xf]
    %v818 = vld [vmem:[#allocation9 + $0x4] sm:$0xf]
    %v819 = vld [vmem:[#allocation9 + $0x8] sm:$0xf]
    %v820 = vld [vmem:[#allocation9 + $0xc] sm:$0xf]
    %v821 = vld [vmem:[#allocation9 + $0x10] sm:$0xf]
    %v822 = vld [vmem:[#allocation9 + $0x14] sm:$0xf]
    %v823 = vld [vmem:[#allocation9 + $0x18] sm:$0xf]
    %v824 = vld [vmem:[#allocation9 + $0x1c] sm:$0xf]
    %v825 = vld [vmem:[#allocation9 + $0x20] sm:$0xf]
    %v826 = vld [vmem:[#allocation9 + $0x24] sm:$0xf]
    %v827 = vld [vmem:[#allocation9 + $0x28] sm:$0xf]
    %v828 = vld [vmem:[#allocation9 + $0x2c] sm:$0xf]
    %v829 = vld [vmem:[#allocation9 + $0x30] sm:$0xf]
    %v830 = vld [vmem:[#allocation9 + $0x34] sm:$0xf]
    %v831 = vld [vmem:[#allocation9 + $0x38] sm:$0xf]
    %v832 = vld [vmem:[#allocation9 + $0x3c] sm:$0xf]
    %v833 = vld [vmem:[#allocation9 + $0x40] sm:$0xf]
    %v834 = vld [vmem:[#allocation9 + $0x44] sm:$0xf]
    %v835 = vld [vmem:[#allocation9 + $0x48] sm:$0xf]
    %v836 = vld [vmem:[#allocation9 + $0x4c] sm:$0xf]
    %v837 = vld [vmem:[#allocation9 + $0x50] sm:$0xf]
    %v838 = vld [vmem:[#allocation9 + $0x54] sm:$0xf]
    %v839 = vld [vmem:[#allocation9 + $0x58] sm:$0xf]
    %v840 = vld [vmem:[#allocation9 + $0x5c] sm:$0xf]
    %v841 = vld [vmem:[#allocation9 + $0x60] sm:$0xf]
    %v842 = vld [vmem:[#allocation9 + $0x64] sm:$0xf]
    %v843 = vld [vmem:[#allocation9 + $0x68] sm:$0xf]
    %v844 = vld [vmem:[#allocation9 + $0x6c] sm:$0xf]
    %v845 = vld [vmem:[#allocation9 + $0x70] sm:$0xf]
    %v846 = vld [vmem:[#allocation9 + $0x74] sm:$0xf]
    %v847 = vld [vmem:[#allocation9 + $0x78] sm:$0xf]
    %v848 = vld [vmem:[#allocation9 + $0x7c] sm:$0xf]
    %v849 = vld [vmem:[%s8] sm:$0x1]
    %v851 = vlaneseq
    %v852 = vshrl.u32 %v851, 7
    %v853 = vsub.s32 0, %v852
    %v854 = vrot.slane %v849, %v853
    %v888 = vunpack.c.l.b16 %v817
    %v889 = vunpack.c.l.b16 %v818
    %v890 = vunpack.c.l.b16 %v819
    %v891 = vunpack.c.l.b16 %v820
    %v892 = vunpack.c.l.b16 %v821
    %v893 = vunpack.c.l.b16 %v822
    %v894 = vunpack.c.l.b16 %v823
    %v895 = vunpack.c.l.b16 %v824
    %v896 = vunpack.c.l.b16 %v825
    %v897 = vunpack.c.l.b16 %v826
    %v898 = vunpack.c.l.b16 %v827
    %v899 = vunpack.c.l.b16 %v828
    %v900 = vunpack.c.l.b16 %v829
    %v901 = vunpack.c.l.b16 %v830
    %v902 = vunpack.c.l.b16 %v831
    %v903 = vunpack.c.l.b16 %v832
    %v904 = vunpack.c.l.b16 %v833
    %v905 = vunpack.c.l.b16 %v834
    %v906 = vunpack.c.l.b16 %v835
    %v907 = vunpack.c.l.b16 %v836
    %v908 = vunpack.c.l.b16 %v837
    %v909 = vunpack.c.l.b16 %v838
    %v910 = vunpack.c.l.b16 %v839
    %v911 = vunpack.c.l.b16 %v840
    %v912 = vunpack.c.l.b16 %v841
    %v913 = vunpack.c.l.b16 %v842
    %v914 = vunpack.c.l.b16 %v843
    %v915 = vunpack.c.l.b16 %v844
    %v916 = vunpack.c.l.b16 %v845
    %v917 = vunpack.c.l.b16 %v846
    %v918 = vunpack.c.l.b16 %v847
    %v919 = vunpack.c.l.b16 %v848
    %v920 = vpack.c.b16 %v889, %v888
    %v921 = vpack.c.b16 %v891, %v890
    %v922 = vpack.c.b16 %v893, %v892
    %v923 = vpack.c.b16 %v895, %v894
    %v924 = vpack.c.b16 %v897, %v896
    %v925 = vpack.c.b16 %v899, %v898
    %v926 = vpack.c.b16 %v901, %v900
    %v927 = vpack.c.b16 %v903, %v902
    %v928 = vpack.c.b16 %v905, %v904
    %v929 = vpack.c.b16 %v907, %v906
    %v930 = vpack.c.b16 %v909, %v908
    %v931 = vpack.c.b16 %v911, %v910
    %v932 = vpack.c.b16 %v913, %v912
    %v933 = vpack.c.b16 %v915, %v914
    %v934 = vpack.c.b16 %v917, %v916
    %v935 = vpack.c.b16 %v919, %v918
    %952 = vmatprep.subr.bf16.mxu0 0
    %953 = vmatpush1.bf16.msra.mxu0 %v920
    %954 = vmatprep.subr.bf16.mxu0 0
    %955 = vmatpush1.bf16.msra.mxu0 %v921
    %956 = vmatprep.subr.bf16.mxu0 0
    %957 = vmatpush1.bf16.msra.mxu0 %v922
    %958 = vmatprep.subr.bf16.mxu0 0
    %959 = vmatpush1.bf16.msra.mxu0 %v923
    %960 = vmatprep.subr.bf16.mxu0 0
    %961 = vmatpush1.bf16.msra.mxu0 %v924
    %962 = vmatprep.subr.bf16.mxu0 0
    %963 = vmatpush1.bf16.msra.mxu0 %v925
    %964 = vmatprep.subr.bf16.mxu0 0
    %965 = vmatpush1.bf16.msra.mxu0 %v926
    %966 = vmatprep.subr.bf16.mxu0 0
    %967 = vmatpush1.bf16.msra.mxu0 %v927
    %968 = vmatprep.subr.bf16.mxu0 0
    %969 = vmatpush1.bf16.msra.mxu0 %v928
    %970 = vmatprep.subr.bf16.mxu0 0
    %971 = vmatpush1.bf16.msra.mxu0 %v929
    %972 = vmatprep.subr.bf16.mxu0 0
    %973 = vmatpush1.bf16.msra.mxu0 %v930
    %974 = vmatprep.subr.bf16.mxu0 0
    %975 = vmatpush1.bf16.msra.mxu0 %v931
    %976 = vmatprep.subr.bf16.mxu0 0
    %977 = vmatpush1.bf16.msra.mxu0 %v932
    %978 = vmatprep.subr.bf16.mxu0 0
    %979 = vmatpush1.bf16.msra.mxu0 %v933
    %980 = vmatprep.subr.bf16.mxu0 0
    %981 = vmatpush1.bf16.msra.mxu0 %v934
    %982 = vmatprep.subr.bf16.mxu0 0
    %983 = vmatpush1.bf16.msra.mxu0 %v935
    %984 = vmatprep.mubr.bf16.mxu0 %v810
    %985 = vmatmul.mubr.bf16.gmra.mrb[0].mxu0 %v809
    %v986 = vpop.f32.mrb[0].mxu0
    %v987 = vadd.f32 %v854, %v986
    %v988 = vpop.f32.mrb[0].mxu0
    %v989 = vpop.f32.mrb[0].mxu0
    %v990 = vadd.f32 %v854, %v989
    %v991 = vpop.f32.mrb[0].mxu0
    %992 = vmatprep.mubr.bf16.mxu0 %v812
    %993 = vmatmul.mubr.bf16.gmra.mrb[0].mxu0 %v811
    %v994 = vpop.f32.mrb[0].mxu0
    %v995 = vadd.f32 %v854, %v994
    %v996 = vpop.f32.mrb[0].mxu0
    %v997 = vpop.f32.mrb[0].mxu0
    %v998 = vadd.f32 %v854, %v997
    %v999 = vpop.f32.mrb[0].mxu0
    %1000 = vmatprep.mubr.bf16.mxu0 %v814
    %1001 = vmatmul.mubr.bf16.gmra.mrb[0].mxu0 %v813
    %v1002 = vpop.f32.mrb[0].mxu0
    %v1003 = vadd.f32 %v854, %v1002
    %v1004 = vpop.f32.mrb[0].mxu0
    %v1005 = vpop.f32.mrb[0].mxu0
    %v1006 = vadd.f32 %v854, %v1005
    %v1007 = vpop.f32.mrb[0].mxu0
    %1008 = vmatprep.mubr.bf16.mxu0 %v816
    %1009 = vmatmul.mubr.bf16.gmra.mrb[0].mxu0 %v815
    %v1010 = vpop.f32.mrb[0].mxu0
    %v1011 = vadd.f32 %v854, %v1010
    %v1012 = vpop.f32.mrb[0].mxu0
    %v1013 = vpop.f32.mrb[0].mxu0
    %v1014 = vadd.f32 %v854, %v1013
    %v1015 = vpop.f32.mrb[0].mxu0
    %1016 = vdwg.mxu0
    %v1017 = vmax.f32 %v987, 0.0
    %v1018 = vmax.f32 %v990, 0.0
    %v1019 = vmax.f32 %v995, 0.0
    %v1020 = vmax.f32 %v998, 0.0
    %v1021 = vmax.f32 %v1003, 0.0
    %v1022 = vmax.f32 %v1006, 0.0
    %v1023 = vmax.f32 %v1011, 0.0
    %v1024 = vmax.f32 %v1014, 0.0
    %v1025 = vpack.c.bf16 %v1018, %v1017
    %v1026 = vpack.c.bf16 %v1020, %v1019
    %v1027 = vpack.c.bf16 %v1022, %v1021
    %v1028 = vpack.c.bf16 %v1024, %v1023
    %v1029 = vld [vmem:[#allocation10] sm:$0xf]
    %v1030 = vld [vmem:[#allocation10 + $0x4] sm:$0xf]
    %v1031 = vld [vmem:[#allocation10 + $0x8] sm:$0xf]
    %v1032 = vld [vmem:[#allocation10 + $0xc] sm:$0xf]
    %v1033 = vld [vmem:[#allocation10 + $0x10] sm:$0xf]
    %v1034 = vld [vmem:[#allocation10 + $0x14] sm:$0xf]
    %v1035 = vld [vmem:[#allocation10 + $0x18] sm:$0xf]
    %v1036 = vld [vmem:[#allocation10 + $0x1c] sm:$0xf]
    %v1037 = vld [vmem:[#allocation10 + $0x20] sm:$0xf]
    %v1038 = vld [vmem:[#allocation10 + $0x24] sm:$0xf]
    %v1039 = vld [vmem:[#allocation10 + $0x28] sm:$0xf]
    %v1040 = vld [vmem:[#allocation10 + $0x2c] sm:$0xf]
    %v1041 = vld [vmem:[#allocation10 + $0x30] sm:$0xf]
    %v1042 = vld [vmem:[#allocation10 + $0x34] sm:$0xf]
    %v1043 = vld [vmem:[#allocation10 + $0x38] sm:$0xf]
    %v1044 = vld [vmem:[#allocation10 + $0x3c] sm:$0xf]
    %v1045 = vld [vmem:[%s10] sm:$0x1]
    %v1047 = vlaneseq
    %v1048 = vshrl.u32 %v1047, 7
    %v1049 = vsub.s32 0, %v1048
    %v1050 = vrot.slane %v1045, %v1049
    %v1068 = vunpack.c.l.b16 %v1029
    %v1069 = vunpack.c.l.b16 %v1030
    %v1070 = vunpack.c.l.b16 %v1031
    %v1071 = vunpack.c.l.b16 %v1032
    %v1072 = vunpack.c.l.b16 %v1033
    %v1073 = vunpack.c.l.b16 %v1034
    %v1074 = vunpack.c.l.b16 %v1035
    %v1075 = vunpack.c.l.b16 %v1036
    %v1076 = vunpack.c.l.b16 %v1037
    %v1077 = vunpack.c.l.b16 %v1038
    %v1078 = vunpack.c.l.b16 %v1039
    %v1079 = vunpack.c.l.b16 %v1040
    %v1080 = vunpack.c.l.b16 %v1041
    %v1081 = vunpack.c.l.b16 %v1042
    %v1082 = vunpack.c.l.b16 %v1043
    %v1083 = vunpack.c.l.b16 %v1044
    %v1084 = vpack.c.b16 %v1069, %v1068
    %v1085 = vpack.c.b16 %v1071, %v1070
    %v1086 = vpack.c.b16 %v1073, %v1072
    %v1087 = vpack.c.b16 %v1075, %v1074
    %v1088 = vpack.c.b16 %v1077, %v1076
    %v1089 = vpack.c.b16 %v1079, %v1078
    %v1090 = vpack.c.b16 %v1081, %v1080
    %v1091 = vpack.c.b16 %v1083, %v1082
    %1100 = vmatprep.subr.bf16.mxu0 0
    %1101 = vmatpush1.bf16.msra.mxu0 %v1084
    %1102 = vmatprep.subr.bf16.mxu0 0
    %1103 = vmatpush1.bf16.msra.mxu0 %v1085
    %1104 = vmatprep.subr.bf16.mxu0 0
    %1105 = vmatpush1.bf16.msra.mxu0 %v1086
    %1106 = vmatprep.subr.bf16.mxu0 0
    %1107 = vmatpush1.bf16.msra.mxu0 %v1087
    %1108 = vmatprep.subr.bf16.mxu0 0
    %1109 = vmatpush1.bf16.msra.mxu0 %v1088
    %1110 = vmatprep.subr.bf16.mxu0 0
    %1111 = vmatpush1.bf16.msra.mxu0 %v1089
    %1112 = vmatprep.subr.bf16.mxu0 0
    %1113 = vmatpush1.bf16.msra.mxu0 %v1090
    %1114 = vmatprep.subr.bf16.mxu0 0
    %1115 = vmatpush1.bf16.msra.mxu0 %v1091
    %1116 = vmatprep.subr.bf16.mxu0 0
    %1117 = vmatpush1.bf16.msra.mxu0 0
    %1118 = vmatprep.subr.bf16.mxu0 0
    %1119 = vmatpush1.bf16.msra.mxu0 0
    %1120 = vmatprep.subr.bf16.mxu0 0
    %1121 = vmatpush1.bf16.msra.mxu0 0
    %1122 = vmatprep.subr.bf16.mxu0 0
    %1123 = vmatpush1.bf16.msra.mxu0 0
    %1124 = vmatprep.subr.bf16.mxu0 0
    %1125 = vmatpush1.bf16.msra.mxu0 0
    %1126 = vmatprep.subr.bf16.mxu0 0
    %1127 = vmatpush1.bf16.msra.mxu0 0
    %1128 = vmatprep.subr.bf16.mxu0 0
    %1129 = vmatpush1.bf16.msra.mxu0 0
    %1130 = vmatprep.subr.bf16.mxu0 0
    %1131 = vmatpush1.bf16.msra.mxu0 0
    %1132 = vmatprep.mubr.bf16.mxu0 0
    %1133 = vmatmul.mubr.bf16.gmra.mrb[0].mxu0 %v1025
    %v1134 = vpop.f32.mrb[0].mxu0
    %v1135 = vadd.f32 %v1050, %v1134
    %v1136 = vpop.f32.mrb[0].mxu0
    %v1137 = vpop.f32.mrb[0].mxu0
    %v1138 = vadd.f32 %v1050, %v1137
    %v1139 = vpop.f32.mrb[0].mxu0
    %1140 = vmatprep.mubr.bf16.mxu0 0
    %1141 = vmatmul.mubr.bf16.gmra.mrb[0].mxu0 %v1026
    %v1142 = vpop.f32.mrb[0].mxu0
    %v1143 = vadd.f32 %v1050, %v1142
    %v1144 = vpop.f32.mrb[0].mxu0
    %v1145 = vpop.f32.mrb[0].mxu0
    %v1146 = vadd.f32 %v1050, %v1145
    %v1147 = vpop.f32.mrb[0].mxu0
    %1148 = vmatprep.mubr.bf16.mxu0 0
    %1149 = vmatmul.mubr.bf16.gmra.mrb[0].mxu0 %v1027
    %v1150 = vpop.f32.mrb[0].mxu0
    %v1151 = vadd.f32 %v1050, %v1150
    %v1152 = vpop.f32.mrb[0].mxu0
    %v1153 = vpop.f32.mrb[0].mxu0
    %v1154 = vadd.f32 %v1050, %v1153
    %v1155 = vpop.f32.mrb[0].mxu0
    %1156 = vmatprep.mubr.bf16.mxu0 0
    %1157 = vmatmul.mubr.bf16.gmra.mrb[0].mxu0 %v1028
    %v1158 = vpop.f32.mrb[0].mxu0
    %v1159 = vadd.f32 %v1050, %v1158
    %v1160 = vpop.f32.mrb[0].mxu0
    %v1161 = vpop.f32.mrb[0].mxu0
    %v1162 = vadd.f32 %v1050, %v1161
    %v1163 = vpop.f32.mrb[0].mxu0
    %1164 = vdwg.mxu0
    %v1165 = vpack.c.bf16 %v1138, %v1135
    %v1166 = vpack.c.bf16 %v1146, %v1143
    %v1167 = vpack.c.bf16 %v1154, %v1151
    %v1168 = vpack.c.bf16 %v1162, %v1159
    %v1173 = vunpack.c.l.b16 %v1165
    %v1174 = vunpack.c.h.b16 %v1165
    %v1175 = vunpack.c.l.b16 %v1166
    %v1176 = vunpack.c.h.b16 %v1166
    %v1177 = vunpack.c.l.b16 %v1167
    %v1178 = vunpack.c.h.b16 %v1167
    %v1179 = vunpack.c.l.b16 %v1168
    %v1180 = vunpack.c.h.b16 %v1168
    %v1181 = vpack.c.b16 %v1173, %v1173
    %v1182 = vpack.c.b16 %v1174, %v1174
    %v1183 = vpack.c.b16 %v1175, %v1175
    %v1184 = vpack.c.b16 %v1176, %v1176
    %v1185 = vpack.c.b16 %v1177, %v1177
    %v1186 = vpack.c.b16 %v1178, %v1178
    %v1187 = vpack.c.b16 %v1179, %v1179
    %v1188 = vpack.c.b16 %v1180, %v1180
    %1197 = vst [vmem:[%s11] sm:$0xf] %v1181
    %1198 = vst [vmem:[%s11 + $0x4] sm:$0xf] %v1182
    %1199 = vst [vmem:[%s11 + $0x8] sm:$0xf] %v1183
    %1200 = vst [vmem:[%s11 + $0xc] sm:$0xf] %v1184
    %1201 = vst [vmem:[%s11 + $0x10] sm:$0xf] %v1185
    %1202 = vst [vmem:[%s11 + $0x14] sm:$0xf] %v1186
    %1203 = vst [vmem:[%s11 + $0x18] sm:$0xf] %v1187
    %1204 = vst [vmem:[%s11 + $0x1c] sm:$0xf] %v1188
    // Predicated region
    $region70: #{deep_classifier_forward.1} parent=1 // pred_check
      _
    $region71: #{deep_classifier_forward.1} parent=1 // pred_check_branch
      %1206 = sbr.rel (0) target = $region73
    $region72: #{deep_classifier_forward.1} parent=1 // pred_region
      _
    $region73: #{deep_classifier_forward.1} parent=1 // pred_fallthru
      _
    // Predicated region
    $region74: #{deep_classifier_forward.1} parent=1 // pred_check
      _
    $region75: #{deep_classifier_forward.1} parent=1 // pred_check_branch
      %1208 = sbr.rel (0) target = $region77
    $region76: #{deep_classifier_forward.1} parent=1 // pred_region
      _
    $region77: #{deep_classifier_forward.1} parent=1 // pred_fallthru
      _
    %1209 = vsyncpa [#allocation3], 1
    %1210 = vsyncpa [#allocation5], 1
    %1211 = vsyncpa [#allocation8], 1
    %1212 = vsyncpa [#allocation11], 1

</llo_original>
